<compile_context>
chip_gen: v5e
topology: v5e:2x2
jax: 0.10.0
libtpu: 0.0.40
codegen_flags: <defaults>
</compile_context>

<pallas_src>
import jax
import jax.numpy as jnp
import numpy as np
from jax.experimental import pallas as pl
from jax.experimental.pallas import tpu as pltpu

EPS = 1e-5
H1, H2, H3 = 128, 64, 16  # fc1 / fc2 / fc3 widths (from the PyTorch module)


def _round_up(x, m):
    return (x + m - 1) // m * m


# ----------------------------------------------------------------------------
# Kernel
# ----------------------------------------------------------------------------
def make_customer_encoder_kernel(cfg):
    num_c = cfg["num_customer"]
    num_a = cfg["num_addr"]
    num_g = cfg["num_age"]
    num_co = cfg["num_country"]
    d_emb = cfg["d_emb"]
    input_size = cfg["input_size"]
    off_w1e = cfg["off_w1e"]
    off_w1o = cfg["off_w1o"]
    off_w2 = cfg["off_w2"]
    off_w3 = cfg["off_w3"]
    off_bn = cfg["off_bn"]
    n_emb_rows = num_c + num_a + num_g + num_co

    def bn_relu(y, g, beta):
        # Training-mode BatchNorm1d (batch stats, biased var, eps inside rsqrt)
        # folded into a single per-feature scale/shift, then ReLU.
        mean = jnp.mean(y, axis=0, keepdims=True)
        centered = y - mean
        var = jnp.mean(centered * centered, axis=0, keepdims=True)
        scale = g * jax.lax.rsqrt(var + EPS)          # (1, F)
        shift = beta - mean * scale                   # (1, F)
        return jnp.maximum(y * scale + shift, 0.0)    # 2 full-width ops + relu

    def kernel(idx_ref, xo_ref, emb_ref, p_ref, o_ref):
        B = idx_ref.shape[0]
        idx = idx_ref[...]                                        # (B, 4) int32

        # Combined one-hot over the block-diagonal packed embedding matrix.
        pos = jax.lax.broadcasted_iota(jnp.int32, (B, n_emb_rows), 1)
        t_c = idx[:, 0:1]
        t_a = idx[:, 1:2] + num_c
        t_g = idx[:, 2:3] + (num_c + num_a)
        t_o = idx[:, 3:4] + (num_c + num_a + num_g)
        onehot = ((pos == t_c) | (pos == t_a) | (pos == t_g) | (pos == t_o)
                  ).astype(jnp.float32)                           # (B, n_emb_rows)
        # == cat(e_customer, e_addr, e_age, e_country) because emb_ref is
        # block-diagonal; gather + concat done as one MXU matmul.
        x_emb = jnp.dot(onehot, emb_ref[...],
                        preferred_element_type=jnp.float32)       # (B, d_emb)

        # BN gamma/beta rows: one aligned (8, 128) load, sliced as values.
        bn = p_ref[off_bn:off_bn + 8, :]
        g1, be1 = bn[0:1, :H1], bn[1:2, :H1]
        g2, be2 = bn[2:3, :H2], bn[3:4, :H2]
        g3, be3 = bn[4:5, :H3], bn[5:6, :H3]

        # Layer 1: segment matmul over the packed w1 row bands.
        # (Linear bias omitted -- canceled by the BN mean subtraction.)
        y1 = (jnp.dot(x_emb, p_ref[off_w1e:off_w1e + d_emb, :],
                      preferred_element_type=jnp.float32)
              + jnp.dot(xo_ref[...], p_ref[off_w1o:off_w1o + input_size, :],
                        preferred_element_type=jnp.float32))      # (B, 128)
        h1 = bn_relu(y1, g1, be1)

        # Layer 2
        y2 = jnp.dot(h1, p_ref[off_w2:off_w2 + H1, :H2],
                     preferred_element_type=jnp.float32)          # (B, 64)
        h2 = bn_relu(y2, g2, be2)

        # Layer 3
        y3 = jnp.dot(h2, p_ref[off_w3:off_w3 + H2, :H3],
                     preferred_element_type=jnp.float32)          # (B, 16)
        h3 = bn_relu(y3, g3, be3)

        o_ref[...] = h3

    return kernel


# ----------------------------------------------------------------------------
# Parameter packing (done once at init, outside the hot path)
# ----------------------------------------------------------------------------
def pack_params(params, input_size):
    emb_c, emb_a = params["emb_customer"], params["emb_addr"]
    emb_g, emb_co = params["emb_age"], params["emb_country"]
    num_c, d_c = emb_c.shape
    num_a, d_a = emb_a.shape
    num_g, d_g = emb_g.shape
    num_co, d_co = emb_co.shape
    d_emb = d_c + d_a + d_g + d_co
    n_rows = num_c + num_a + num_g + num_co

    # Block-diagonal embedding matrix: onehot @ emb_block == concatenated embs.
    emb_block = jnp.zeros((n_rows, d_emb), jnp.float32)
    r = c = 0
    for tbl in (emb_c, emb_a, emb_g, emb_co):
        n, d = tbl.shape
        emb_block = emb_block.at[r:r + n, c:c + d].set(tbl.astype(jnp.float32))
        r += n
        c += d

    # Single lane-aligned parameter slab; all row offsets are multiples of 8.
    off_w1e = 0
    off_w1o = _round_up(d_emb, 8)
    off_w2 = _round_up(off_w1o + input_size, 8)
    off_w3 = off_w2 + H1
    off_bn = _round_up(off_w3 + H2, 8)
    total = off_bn + 8

    w1, w2, w3 = params["w1"], params["w2"], params["w3"]
    w_pack = jnp.zeros((total, 128), jnp.float32)
    w_pack = w_pack.at[off_w1e:off_w1e + d_emb, :H1].set(w1[:d_emb])
    w_pack = w_pack.at[off_w1o:off_w1o + input_size, :H1].set(w1[d_emb:])
    w_pack = w_pack.at[off_w2:off_w2 + H1, :H2].set(w2)
    w_pack = w_pack.at[off_w3:off_w3 + H2, :H3].set(w3)
    w_pack = w_pack.at[off_bn + 0, :H1].set(params["g1"][0])
    w_pack = w_pack.at[off_bn + 1, :H1].set(params["be1"][0])
    w_pack = w_pack.at[off_bn + 2, :H2].set(params["g2"][0])
    w_pack = w_pack.at[off_bn + 3, :H2].set(params["be2"][0])
    w_pack = w_pack.at[off_bn + 4, :H3].set(params["g3"][0])
    w_pack = w_pack.at[off_bn + 5, :H3].set(params["be3"][0])

    cfg = dict(num_customer=num_c, num_addr=num_a, num_age=num_g,
               num_country=num_co, d_emb=d_emb, input_size=input_size,
               off_w1e=off_w1e, off_w1o=off_w1o, off_w2=off_w2,
               off_w3=off_w3, off_bn=off_bn)
    return {"emb_block": emb_block, "w_pack": w_pack, "cfg": cfg}


# ----------------------------------------------------------------------------
# Wrapper
# ----------------------------------------------------------------------------
def customer_encoder_forward(x_customer, x_addr, x_age, x_country, x_other,
                             packed):
    cfg = packed["cfg"]
    idx = jnp.stack([x_customer, x_addr, x_age, x_country],
                    axis=1).astype(jnp.int32)                     # (B, 4)
    B = x_other.shape[0]
    kernel = make_customer_encoder_kernel(cfg)

    # Everything is tiny; keep whole arrays VMEM-resident, no grid (so BN uses
    # exact global batch statistics). 4 input DMAs + 1 output DMA total.
    vmem = pl.BlockSpec(memory_space=pltpu.MemorySpace.VMEM)
    return pl.pallas_call(
        kernel,
        out_shape=jax.ShapeDtypeStruct((B, H3), jnp.float32),
        in_specs=[vmem, vmem, vmem, vmem],
        out_specs=vmem,
    )(idx, x_other.astype(jnp.float32), packed["emb_block"], packed["w_pack"])


# ----------------------------------------------------------------------------
# Pure-JAX reference mirroring the PyTorch forward (training-mode BN, biases).
# ----------------------------------------------------------------------------
def reference_forward(x_customer, x_addr, x_age, x_country, x_other, params):
    e_c = jnp.take(params["emb_customer"], x_customer, axis=0)
    e_a = jnp.take(params["emb_addr"], x_addr, axis=0)
    e_g = jnp.take(params["emb_age"], x_age, axis=0)
    e_co = jnp.take(params["emb_country"], x_country, axis=0)
    h = jnp.concatenate([e_c, e_a, e_g, e_co, x_other], axis=1).astype(jnp.float32)

    def layer(h, w, b, g, be):
        y = h @ w + b
        mean = jnp.mean(y, axis=0, keepdims=True)
        var = jnp.mean((y - mean) ** 2, axis=0, keepdims=True)
        return jnp.maximum((y - mean) / jnp.sqrt(var + EPS) * g + be, 0.0)

    h = layer(h, params["w1"], params["b1"], params["g1"], params["be1"])
    h = layer(h, params["w2"], params["b2"], params["g2"], params["be2"])
    h = layer(h, params["w3"], params["b3"], params["g3"], params["be3"])
    return h


# ----------------------------------------------------------------------------
# Init (PyTorch-default initializers)
# ----------------------------------------------------------------------------
def init_params(key, input_size, num_customer, num_addr, num_age, num_country,
                customer_emb_dim, addr_emb_dim, age_emb_dim, country_emb_dim):
    keys = jax.random.split(key, 8)

    def linear_init(k, fan_in, fan_out):
        lim = 1.0 / np.sqrt(fan_in)
        kw, kb = jax.random.split(k)
        w = jax.random.uniform(kw, (fan_in, fan_out), jnp.float32, -lim, lim)
        b = jax.random.uniform(kb, (1, fan_out), jnp.float32, -lim, lim)
        return w, b

    d_in = input_size + customer_emb_dim + addr_emb_dim + age_emb_dim + country_emb_dim
    w1, b1 = linear_init(keys[4], d_in, H1)
    w2, b2 = linear_init(keys[5], H1, H2)
    w3, b3 = linear_init(keys[6], H2, H3)

    return {
        # nn.Embedding default init: N(0, 1)
        "emb_customer": jax.random.normal(keys[0], (num_customer, customer_emb_dim), jnp.float32),
        "emb_addr": jax.random.normal(keys[1], (num_addr, addr_emb_dim), jnp.float32),
        "emb_age": jax.random.normal(keys[2], (num_age, age_emb_dim), jnp.float32),
        "emb_country": jax.random.normal(keys[3], (num_country, country_emb_dim), jnp.float32),
        "w1": w1, "b1": b1, "w2": w2, "b2": b2, "w3": w3, "b3": b3,
        # nn.BatchNorm1d default affine params: weight=1, bias=0
        "g1": jnp.ones((1, H1), jnp.float32), "be1": jnp.zeros((1, H1), jnp.float32),
        "g2": jnp.ones((1, H2), jnp.float32), "be2": jnp.zeros((1, H2), jnp.float32),
        "g3": jnp.ones((1, H3), jnp.float32), "be3": jnp.zeros((1, H3), jnp.float32),
    }


if __name__ == "__main__":
    # Small, deterministic example shapes (B > 1 so training-mode BN is valid).
    B = 8
    input_size = 10
    num_customer, num_addr, num_age, num_country = 50, 30, 10, 20
    customer_emb_dim, addr_emb_dim, age_emb_dim, country_emb_dim = 8, 6, 4, 4

    key = jax.random.PRNGKey(0)
    kp, k1, k2, k3, k4, k5 = jax.random.split(key, 6)

    params = init_params(kp, input_size, num_customer, num_addr, num_age,
                         num_country, customer_emb_dim, addr_emb_dim,
                         age_emb_dim, country_emb_dim)
    packed = pack_params(params, input_size)

    x_customer = jax.random.randint(k1, (B,), 0, num_customer, dtype=jnp.int32)
    x_addr = jax.random.randint(k2, (B,), 0, num_addr, dtype=jnp.int32)
    x_age = jax.random.randint(k3, (B,), 0, num_age, dtype=jnp.int32)
    x_country = jax.random.randint(k4, (B,), 0, num_country, dtype=jnp.int32)
    x_other = jax.random.normal(k5, (B, input_size), jnp.float32)

    out = customer_encoder_forward(x_customer, x_addr, x_age, x_country,
                                   x_other, packed)
    out = jax.block_until_ready(out)

    ref = jax.block_until_ready(
        reference_forward(x_customer, x_addr, x_age, x_country, x_other, params))

    assert out.shape == (B, H3) and out.dtype == jnp.float32
    np.testing.assert_allclose(np.asarray(out), np.asarray(ref),
                               rtol=1e-4, atol=1e-4)
    print("KERNEL_OK")
</pallas_src>

<mosaic_0001>
module attributes {stable_mosaic.version = 11 : i64} {
  func.func @kernel(%arg0: memref<8x4xi32, #tpu.memory_space<vmem>>, %arg1: memref<8x10xf32, #tpu.memory_space<vmem>>, %arg2: memref<110x22xf32, #tpu.memory_space<vmem>>, %arg3: memref<240x128xf32, #tpu.memory_space<vmem>>, %arg4: memref<8x16xf32, #tpu.memory_space<vmem>>) attributes {dimension_semantics = [], scalar_prefetch = 0 : i64, scratch_operands = 0 : i64, tpu.core_type = #tpu.core_type<tc>} {
    %c0 = arith.constant 0 : index
    %c0_0 = arith.constant 0 : index
    %0 = vector.load %arg0[%c0, %c0_0] : memref<8x4xi32, #tpu.memory_space<vmem>>, vector<8x4xi32>
    %1 = tpu.iota {dimensions = array<i32: 1>} : vector<8x110xi32>
    %2 = vector.extract_strided_slice %0 {offsets = [0, 0], sizes = [8, 1], strides = [1, 1]} : vector<8x4xi32> to vector<8x1xi32>
    %3 = vector.extract_strided_slice %0 {offsets = [0, 1], sizes = [8, 1], strides = [1, 1]} : vector<8x4xi32> to vector<8x1xi32>
    %c50_i32 = arith.constant 50 : i32
    %4 = vector.broadcast %c50_i32 : i32 to vector<8x1xi32>
    %5 = arith.addi %3, %4 : vector<8x1xi32>
    %6 = vector.extract_strided_slice %0 {offsets = [0, 2], sizes = [8, 1], strides = [1, 1]} : vector<8x4xi32> to vector<8x1xi32>
    %c80_i32 = arith.constant 80 : i32
    %7 = vector.broadcast %c80_i32 : i32 to vector<8x1xi32>
    %8 = arith.addi %6, %7 : vector<8x1xi32>
    %9 = vector.extract_strided_slice %0 {offsets = [0, 3], sizes = [8, 1], strides = [1, 1]} : vector<8x4xi32> to vector<8x1xi32>
    %c90_i32 = arith.constant 90 : i32
    %10 = vector.broadcast %c90_i32 : i32 to vector<8x1xi32>
    %11 = arith.addi %9, %10 : vector<8x1xi32>
    %12 = vector.broadcast %2 : vector<8x1xi32> to vector<8x110xi32>
    %13 = arith.cmpi eq, %1, %12 : vector<8x110xi32>
    %14 = vector.broadcast %5 : vector<8x1xi32> to vector<8x110xi32>
    %15 = arith.cmpi eq, %1, %14 : vector<8x110xi32>
    %16 = arith.ori %13, %15 : vector<8x110xi1>
    %17 = vector.broadcast %8 : vector<8x1xi32> to vector<8x110xi32>
    %18 = arith.cmpi eq, %1, %17 : vector<8x110xi32>
    %19 = arith.ori %16, %18 : vector<8x110xi1>
    %20 = vector.broadcast %11 : vector<8x1xi32> to vector<8x110xi32>
    %21 = arith.cmpi eq, %1, %20 : vector<8x110xi32>
    %22 = arith.ori %19, %21 : vector<8x110xi1>
    %23 = arith.extui %22 : vector<8x110xi1> to vector<8x110xi32>
    %24 = arith.sitofp %23 : vector<8x110xi32> to vector<8x110xf32>
    %c0_1 = arith.constant 0 : index
    %c0_2 = arith.constant 0 : index
    %25 = vector.load %arg2[%c0_1, %c0_2] : memref<110x22xf32, #tpu.memory_space<vmem>>, vector<110x22xf32>
    %cst = arith.constant dense<0.000000e+00> : vector<8x22xf32>
    %26 = tpu.matmul %24, %25, %cst {dimension_numbers = #tpu.dot_dimension_numbers<[1], [0], [0], [1], [0, 0, 1, 1], [], []>} : vector<8x110xf32>, vector<110x22xf32>, vector<8x22xf32> -> vector<8x22xf32>
    %c232 = arith.constant 232 : index
    %c0_3 = arith.constant 0 : index
    %27 = vector.load %arg3[%c232, %c0_3] : memref<240x128xf32, #tpu.memory_space<vmem>>, vector<8x128xf32>
    %28 = vector.extract_strided_slice %27 {offsets = [0, 0], sizes = [1, 128], strides = [1, 1]} : vector<8x128xf32> to vector<1x128xf32>
    %29 = vector.extract_strided_slice %27 {offsets = [1, 0], sizes = [1, 128], strides = [1, 1]} : vector<8x128xf32> to vector<1x128xf32>
    %30 = vector.extract_strided_slice %27 {offsets = [2, 0], sizes = [1, 64], strides = [1, 1]} : vector<8x128xf32> to vector<1x64xf32>
    %31 = vector.extract_strided_slice %27 {offsets = [3, 0], sizes = [1, 64], strides = [1, 1]} : vector<8x128xf32> to vector<1x64xf32>
    %32 = vector.extract_strided_slice %27 {offsets = [4, 0], sizes = [1, 16], strides = [1, 1]} : vector<8x128xf32> to vector<1x16xf32>
    %33 = vector.extract_strided_slice %27 {offsets = [5, 0], sizes = [1, 16], strides = [1, 1]} : vector<8x128xf32> to vector<1x16xf32>
    %c0_4 = arith.constant 0 : index
    %c0_5 = arith.constant 0 : index
    %34 = vector.load %arg3[%c0_4, %c0_5] : memref<240x128xf32, #tpu.memory_space<vmem>>, vector<22x128xf32>
    %cst_6 = arith.constant dense<0.000000e+00> : vector<8x128xf32>
    %35 = tpu.matmul %26, %34, %cst_6 {dimension_numbers = #tpu.dot_dimension_numbers<[1], [0], [0], [1], [0, 0, 1, 1], [], []>} : vector<8x22xf32>, vector<22x128xf32>, vector<8x128xf32> -> vector<8x128xf32>
    %c0_7 = arith.constant 0 : index
    %c0_8 = arith.constant 0 : index
    %36 = vector.load %arg1[%c0_7, %c0_8] : memref<8x10xf32, #tpu.memory_space<vmem>>, vector<8x10xf32>
    %c24 = arith.constant 24 : index
    %c0_9 = arith.constant 0 : index
    %37 = vector.load %arg3[%c24, %c0_9] : memref<240x128xf32, #tpu.memory_space<vmem>>, vector<10x128xf32>
    %cst_10 = arith.constant dense<0.000000e+00> : vector<8x128xf32>
    %38 = tpu.matmul %36, %37, %cst_10 {dimension_numbers = #tpu.dot_dimension_numbers<[1], [0], [0], [1], [0, 0, 1, 1], [], []>} : vector<8x10xf32>, vector<10x128xf32>, vector<8x128xf32> -> vector<8x128xf32>
    %39 = arith.addf %35, %38 : vector<8x128xf32>
    %cst_11 = arith.constant dense<0.000000e+00> : vector<128xf32>
    %40 = vector.multi_reduction <add>, %39, %cst_11 [0] : vector<8x128xf32> to vector<128xf32>
    %41 = vector.shape_cast %40 : vector<128xf32> to vector<1x128xf32>
    %cst_12 = arith.constant 8.000000e+00 : f32
    %42 = vector.broadcast %cst_12 : f32 to vector<1x128xf32>
    %43 = arith.divf %41, %42 : vector<1x128xf32>
    %44 = vector.broadcast %43 : vector<1x128xf32> to vector<8x128xf32>
    %45 = arith.subf %39, %44 : vector<8x128xf32>
    %46 = arith.mulf %45, %45 : vector<8x128xf32>
    %cst_13 = arith.constant dense<0.000000e+00> : vector<128xf32>
    %47 = vector.multi_reduction <add>, %46, %cst_13 [0] : vector<8x128xf32> to vector<128xf32>
    %48 = vector.shape_cast %47 : vector<128xf32> to vector<1x128xf32>
    %cst_14 = arith.constant 8.000000e+00 : f32
    %49 = vector.broadcast %cst_14 : f32 to vector<1x128xf32>
    %50 = arith.divf %48, %49 : vector<1x128xf32>
    %cst_15 = arith.constant 9.99999974E-6 : f32
    %51 = vector.broadcast %cst_15 : f32 to vector<1x128xf32>
    %52 = arith.addf %50, %51 : vector<1x128xf32>
    %53 = math.rsqrt %52 : vector<1x128xf32>
    %54 = arith.mulf %28, %53 : vector<1x128xf32>
    %55 = arith.mulf %43, %54 : vector<1x128xf32>
    %56 = arith.subf %29, %55 : vector<1x128xf32>
    %57 = vector.broadcast %54 : vector<1x128xf32> to vector<8x128xf32>
    %58 = arith.mulf %39, %57 : vector<8x128xf32>
    %59 = vector.broadcast %56 : vector<1x128xf32> to vector<8x128xf32>
    %60 = arith.addf %58, %59 : vector<8x128xf32>
    %cst_16 = arith.constant 0.000000e+00 : f32
    %61 = vector.broadcast %cst_16 : f32 to vector<8x128xf32>
    %62 = arith.maximumf %60, %61 : vector<8x128xf32>
    %c40 = arith.constant 40 : index
    %c0_17 = arith.constant 0 : index
    %63 = vector.load %arg3[%c40, %c0_17] : memref<240x128xf32, #tpu.memory_space<vmem>>, vector<128x64xf32>
    %cst_18 = arith.constant dense<0.000000e+00> : vector<8x64xf32>
    %64 = tpu.matmul %62, %63, %cst_18 {dimension_numbers = #tpu.dot_dimension_numbers<[1], [0], [0], [1], [0, 0, 1, 1], [], []>} : vector<8x128xf32>, vector<128x64xf32>, vector<8x64xf32> -> vector<8x64xf32>
    %cst_19 = arith.constant dense<0.000000e+00> : vector<64xf32>
    %65 = vector.multi_reduction <add>, %64, %cst_19 [0] : vector<8x64xf32> to vector<64xf32>
    %66 = vector.shape_cast %65 : vector<64xf32> to vector<1x64xf32>
    %cst_20 = arith.constant 8.000000e+00 : f32
    %67 = vector.broadcast %cst_20 : f32 to vector<1x64xf32>
    %68 = arith.divf %66, %67 : vector<1x64xf32>
    %69 = vector.broadcast %68 : vector<1x64xf32> to vector<8x64xf32>
    %70 = arith.subf %64, %69 : vector<8x64xf32>
    %71 = arith.mulf %70, %70 : vector<8x64xf32>
    %cst_21 = arith.constant dense<0.000000e+00> : vector<64xf32>
    %72 = vector.multi_reduction <add>, %71, %cst_21 [0] : vector<8x64xf32> to vector<64xf32>
    %73 = vector.shape_cast %72 : vector<64xf32> to vector<1x64xf32>
    %cst_22 = arith.constant 8.000000e+00 : f32
    %74 = vector.broadcast %cst_22 : f32 to vector<1x64xf32>
    %75 = arith.divf %73, %74 : vector<1x64xf32>
    %cst_23 = arith.constant 9.99999974E-6 : f32
    %76 = vector.broadcast %cst_23 : f32 to vector<1x64xf32>
    %77 = arith.addf %75, %76 : vector<1x64xf32>
    %78 = math.rsqrt %77 : vector<1x64xf32>
    %79 = arith.mulf %30, %78 : vector<1x64xf32>
    %80 = arith.mulf %68, %79 : vector<1x64xf32>
    %81 = arith.subf %31, %80 : vector<1x64xf32>
    %82 = vector.broadcast %79 : vector<1x64xf32> to vector<8x64xf32>
    %83 = arith.mulf %64, %82 : vector<8x64xf32>
    %84 = vector.broadcast %81 : vector<1x64xf32> to vector<8x64xf32>
    %85 = arith.addf %83, %84 : vector<8x64xf32>
    %cst_24 = arith.constant 0.000000e+00 : f32
    %86 = vector.broadcast %cst_24 : f32 to vector<8x64xf32>
    %87 = arith.maximumf %85, %86 : vector<8x64xf32>
    %c168 = arith.constant 168 : index
    %c0_25 = arith.constant 0 : index
    %88 = vector.load %arg3[%c168, %c0_25] : memref<240x128xf32, #tpu.memory_space<vmem>>, vector<64x16xf32>
    %cst_26 = arith.constant dense<0.000000e+00> : vector<8x16xf32>
    %89 = tpu.matmul %87, %88, %cst_26 {dimension_numbers = #tpu.dot_dimension_numbers<[1], [0], [0], [1], [0, 0, 1, 1], [], []>} : vector<8x64xf32>, vector<64x16xf32>, vector<8x16xf32> -> vector<8x16xf32>
    %cst_27 = arith.constant dense<0.000000e+00> : vector<16xf32>
    %90 = vector.multi_reduction <add>, %89, %cst_27 [0] : vector<8x16xf32> to vector<16xf32>
    %91 = vector.shape_cast %90 : vector<16xf32> to vector<1x16xf32>
    %cst_28 = arith.constant 8.000000e+00 : f32
    %92 = vector.broadcast %cst_28 : f32 to vector<1x16xf32>
    %93 = arith.divf %91, %92 : vector<1x16xf32>
    %94 = vector.broadcast %93 : vector<1x16xf32> to vector<8x16xf32>
    %95 = arith.subf %89, %94 : vector<8x16xf32>
    %96 = arith.mulf %95, %95 : vector<8x16xf32>
    %cst_29 = arith.constant dense<0.000000e+00> : vector<16xf32>
    %97 = vector.multi_reduction <add>, %96, %cst_29 [0] : vector<8x16xf32> to vector<16xf32>
    %98 = vector.shape_cast %97 : vector<16xf32> to vector<1x16xf32>
    %cst_30 = arith.constant 8.000000e+00 : f32
    %99 = vector.broadcast %cst_30 : f32 to vector<1x16xf32>
    %100 = arith.divf %98, %99 : vector<1x16xf32>
    %cst_31 = arith.constant 9.99999974E-6 : f32
    %101 = vector.broadcast %cst_31 : f32 to vector<1x16xf32>
    %102 = arith.addf %100, %101 : vector<1x16xf32>
    %103 = math.rsqrt %102 : vector<1x16xf32>
    %104 = arith.mulf %32, %103 : vector<1x16xf32>
    %105 = arith.mulf %93, %104 : vector<1x16xf32>
    %106 = arith.subf %33, %105 : vector<1x16xf32>
    %107 = vector.broadcast %104 : vector<1x16xf32> to vector<8x16xf32>
    %108 = arith.mulf %89, %107 : vector<8x16xf32>
    %109 = vector.broadcast %106 : vector<1x16xf32> to vector<8x16xf32>
    %110 = arith.addf %108, %109 : vector<8x16xf32>
    %cst_32 = arith.constant 0.000000e+00 : f32
    %111 = vector.broadcast %cst_32 : f32 to vector<8x16xf32>
    %112 = arith.maximumf %110, %111 : vector<8x16xf32>
    %c0_33 = arith.constant 0 : index
    %c0_34 = arith.constant 0 : index
    %113 = vector.load %arg4[%c0_33, %c0_34] : memref<8x16xf32, #tpu.memory_space<vmem>>, vector<8x16xf32>
    tpu.vector_store %arg4[%c0_33, %c0_34], %112 {strides = array<i32>} : memref<8x16xf32, #tpu.memory_space<vmem>>, vector<8x16xf32>,
    return
  }
}

</mosaic_0001>

<llo_original>
// kernel: tpu_custom_call.1
$region0: #{tpu_custom_call.1}
  #allocation0 [shape = 'u32[]', space=smem, size = 0x4, offset = 0x4, fixed_abs, tag = 'smem constant byte address 0x4 - core index']
  #allocation1 [shape = 'u32[72,128]{1,0:T(1,128)}', space=vmem, size = 0x9000, scoped, tag = 'internal scratch']
  %s0 = inlined_call_operand.vmem [shape: s32[8,4], index: 0, kind: input, shape index: {}]
  %s1 = inlined_call_operand.vmem [shape: f32[8,10], index: 1, kind: input, shape index: {}]
  %s2 = inlined_call_operand.vmem [shape: f32[110,22], index: 2, kind: input, shape index: {}]
  %s3 = inlined_call_operand.hbm [shape: f32[240,128], index: 3, kind: input, shape index: {}]
  %s4 = inlined_call_operand.hbm [shape: f32[8,16], index: 4, kind: output, shape index: {}]
  %s5 = sld [smem:[#allocation0]]
  $region30: #{tpu_custom_call.1} parent=0
    _
  %s7 = ssub.s32 1, %s5
  %s8 = scalar_select 0, %s7, %s5
  $region1: #{tpu_custom_call.1} parent=0
    #allocation2 [shape = 'u8[122880]{0}', space=vmem, size = 0x1e000, scoped, tag = 'input window, operand 3, single buffered']
    #allocation3 [shape = 's32[1]{0}', space=sflag, size = 0x4, scoped, tag = 'scoped memory for tpu_custom_call.1']
    #allocation4 [shape = 's32[1]{0}', space=sflag, size = 0x4, scoped, tag = 'scoped memory for tpu_custom_call.1']
    #allocation5 [shape = 'u8[4096]{0}', space=vmem, size = 0x1000, scoped, tag = 'output window, operand 0, single buffered']
    %9 = vsyncpa [#allocation3], 0
    %10 = vsyncpa [#allocation4], 0
    // Predicated region
    $region2: #{tpu_custom_call.1} parent=1 // pred_check
      _
    $region3: #{tpu_custom_call.1} parent=1 // pred_check_branch
      %12 = sbr.rel (0) target = $region5
    $region4: #{tpu_custom_call.1} parent=1 // pred_region
      _
    $region5: #{tpu_custom_call.1} parent=1 // pred_fallthru
      _
    // Predicated region
    $region6: #{tpu_custom_call.1} parent=1 // pred_check
      _
    $region7: #{tpu_custom_call.1} parent=1 // pred_check_branch
      %14 = sbr.rel (0) target = $region9
    $region8: #{tpu_custom_call.1} parent=1 // pred_region
      _
    $region9: #{tpu_custom_call.1} parent=1 // pred_fallthru
      _
    // Predicated region
    $region10: #{tpu_custom_call.1} parent=1 // pred_check
      _
    $region11: #{tpu_custom_call.1} parent=1 // pred_check_branch
      %16 = sbr.rel (0) target = $region13
    $region12: #{tpu_custom_call.1} parent=1 // pred_region
      _
    $region13: #{tpu_custom_call.1} parent=1 // pred_fallthru
      _
    // Predicated region
    $region14: #{tpu_custom_call.1} parent=1 // pred_check
      _
    $region15: #{tpu_custom_call.1} parent=1 // pred_check_branch
      %18 = sbr.rel (0) target = $region17
    $region16: #{tpu_custom_call.1} parent=1 // pred_region
      %20 = vsyncadd [#allocation3], 0
      %s21 = sshll.u32 %s3, 4
      %s22 = int_to_ptr.hbm [resolvable:$true] %s21
      %s23 = sshll.u32 [#allocation2], 4
      %s24 = int_to_ptr.vmem [resolvable:$true] %s23
      %29 = dma.hbm_to_vmem [thread:$0]  %s22, 3840, %s24, [#allocation3], 128, 128, 8
    $region17: #{tpu_custom_call.1} parent=1 // pred_fallthru
      _
    // Predicated region
    $region18: #{tpu_custom_call.1} parent=1 // pred_check
      _
    $region19: #{tpu_custom_call.1} parent=1 // pred_check_branch
      %31 = sbr.rel (0) target = $region21
    $region20: #{tpu_custom_call.1} parent=1 // pred_region
      %33 = dma.done [#allocation3], 3840
    $region21: #{tpu_custom_call.1} parent=1 // pred_fallthru
      _
    %v34 = vld [vmem:[%s0] sm:$0xff]
    %v35 = vlaneseq
    %v36 = vand.u32 %v35, 127
    %v37 = vadd.s32 %v34, 50
    %v38 = vadd.s32 %v34, 80
    %v39 = vadd.s32 %v34, 90
    %40 = vset.pattern.permute.xlu0 0
    %41 = vperm.xlu0 %40, %v34
    %v42 = vpop.permute.xlu0 %41
    %vm43 = vcmp.eq.s32.totalorder %v36, %v42
    %44 = vset.pattern.permute.xlu0 1
    %45 = vperm.xlu0 %44, %v37
    %v46 = vpop.permute.xlu0 %45
    %vm47 = vcmp.eq.s32.totalorder %v36, %v46
    %vm48 = vmor %vm43, %vm47
    %49 = vset.pattern.permute.xlu0 2
    %50 = vperm.xlu0 %49, %v38
    %v51 = vpop.permute.xlu0 %50
    %vm52 = vcmp.eq.s32.totalorder %v36, %v51
    %vm53 = vmor %vm48, %vm52
    %54 = vset.pattern.permute.xlu0 3
    %55 = vperm.xlu0 %54, %v39
    %v56 = vpop.permute.xlu0 %55
    %vm57 = vcmp.eq.s32.totalorder %v36, %v56
    %vm58 = vmor %vm53, %vm57
    %v59 = vsel %vm58, 1, 0
    %v60 = vcvt.s32.f32 %v59
    %v61 = vld [vmem:[%s2] sm:$0xff]
    %v62 = vld [vmem:[%s2 + $0x8] sm:$0xff]
    %v63 = vld [vmem:[%s2 + $0x10] sm:$0xff]
    %v64 = vld [vmem:[%s2 + $0x18] sm:$0xff]
    %v65 = vld [vmem:[%s2 + $0x20] sm:$0xff]
    %v66 = vld [vmem:[%s2 + $0x28] sm:$0xff]
    %v67 = vld [vmem:[%s2 + $0x30] sm:$0xff]
    %v68 = vld [vmem:[%s2 + $0x38] sm:$0xff]
    %v69 = vld [vmem:[%s2 + $0x40] sm:$0xff]
    %v70 = vld [vmem:[%s2 + $0x48] sm:$0xff]
    %v71 = vld [vmem:[%s2 + $0x50] sm:$0xff]
    %v72 = vld [vmem:[%s2 + $0x58] sm:$0xff]
    %v73 = vld [vmem:[%s2 + $0x60] sm:$0xff]
    %v74 = vld [vmem:[%s2 + $0x68] sm:$0x3f]
    %vm75 = vcmask 900096
    %v77 = vsel %vm75, %v60, 0
    %vm79 = vcmask 1045504
    %v81 = vsel %vm79, %v74, 0
    %83 = vmatpush.msra.mxu0 0.0
    %84 = vmatpush.msra.mxu0 0.0
    %85 = vmatpush.msra.mxu0 %v81
    %86 = vmatpush.msra.mxu0 %v73
    %87 = vmatpush.msra.mxu0 %v72
    %88 = vmatpush.msra.mxu0 %v71
    %89 = vmatpush.msra.mxu0 %v70
    %90 = vmatpush.msra.mxu0 %v69
    %91 = vmatpush.msra.mxu0 %v68
    %92 = vmatpush.msra.mxu0 %v67
    %93 = vmatpush.msra.mxu0 %v66
    %94 = vmatpush.msra.mxu0 %v65
    %95 = vmatpush.msra.mxu0 %v64
    %96 = vmatpush.msra.mxu0 %v63
    %97 = vmatpush.msra.mxu0 %v62
    %98 = vmatpush.msra.mxu0 %v61
    %99 = vmatmul.f32.gmra.mxu0 %v77
    %v100 = vpop.f32.mrf.mxu0
    %v101 = vadd.f32 0.0, %v100
    %102 = vdwg.mxu0
    %v103 = vld [vmem:[#allocation2 + $0xe8] sm:$0xff]
    %v104 = vld [vmem:[#allocation2] sm:$0xff]
    %v105 = vld [vmem:[#allocation2 + $0x8] sm:$0xff]
    %v106 = vld [vmem:[#allocation2 + $0x10] sm:$0x3f]
    %v107 = vld [vmem:[%s1] sm:$0xff]
    %v108 = vld [vmem:[#allocation2 + $0x18] sm:$0xff]
    %v109 = vld [vmem:[#allocation2 + $0x20] sm:$0x3]
    %vm110 = vcmask 80896
    %v112 = vsel %vm110, %v107, 0
    %vm114 = vcmask 1041408
    %v116 = vsel %vm114, %v109, 0
    %118 = vmatpush.msra.mxu0 0.0
    %119 = vmatpush.msra.mxu0 0.0
    %120 = vmatpush.msra.mxu0 0.0
    %121 = vmatpush.msra.mxu0 0.0
    %122 = vmatpush.msra.mxu0 0.0
    %123 = vmatpush.msra.mxu0 0.0
    %124 = vmatpush.msra.mxu0 0.0
    %125 = vmatpush.msra.mxu0 0.0
    %126 = vmatpush.msra.mxu0 0.0
    %127 = vmatpush.msra.mxu0 0.0
    %128 = vmatpush.msra.mxu0 0.0
    %129 = vmatpush.msra.mxu0 0.0
    %130 = vmatpush.msra.mxu0 0.0
    %131 = vmatpush.msra.mxu0 0.0
    %132 = vmatpush.msra.mxu0 %v116
    %133 = vmatpush.msra.mxu0 %v108
    %134 = vmatmul.f32.gmra.mxu0 %v112
    %v135 = vpop.f32.mrf.mxu0
    %v136 = vadd.f32 0.0, %v135
    %137 = vdwg.mxu0
    %vm138 = vcmask 179200
    %v140 = vsel %vm138, %v101, 0
    %v143 = vsel %vm79, %v106, 0
    %145 = vmatpush.msra.mxu0 0.0
    %146 = vmatpush.msra.mxu0 0.0
    %147 = vmatpush.msra.mxu0 0.0
    %148 = vmatpush.msra.mxu0 0.0
    %149 = vmatpush.msra.mxu0 0.0
    %150 = vmatpush.msra.mxu0 0.0
    %151 = vmatpush.msra.mxu0 0.0
    %152 = vmatpush.msra.mxu0 0.0
    %153 = vmatpush.msra.mxu0 0.0
    %154 = vmatpush.msra.mxu0 0.0
    %155 = vmatpush.msra.mxu0 0.0
    %156 = vmatpush.msra.mxu0 0.0
    %157 = vmatpush.msra.mxu0 0.0
    %158 = vmatpush.msra.mxu0 %v143
    %159 = vmatpush.msra.mxu0 %v105
    %160 = vmatpush.msra.mxu0 %v104
    %161 = vmatmul.f32.gmra.mxu0 %v140
    %v162 = vpop.f32.mrf.mxu0
    %v163 = vadd.f32 %v136, %v162
    %164 = vdwg.mxu0
    %v165 = vrot.slane %v163, 4
    %v166 = vadd.f32 %v163, %v165
    %v167 = vrot.slane %v166, 2
    %v168 = vadd.f32 %v166, %v167
    %v169 = vrot.slane %v168, 1
    %v170 = vadd.f32 %v168, %v169
    %v171 = vrcp.pop 8.0
    %v172 = vmul.f32 8.0, %v171
    %v173 = vsub.f32 1.0, %v172
    %v174 = vmul.f32 %v171, %v173
    %v175 = vadd.f32 %v171, %v174
    %vm176 = vweird.f32 %v171
    %v177 = vsel %vm176, %v171, %v175
    %v178 = vmul.f32 %v170, %v177
    %v179 = vsub.f32 %v163, %v178
    %v180 = vmul.f32 %v179, %v179
    %v181 = vrot.slane %v180, 4
    %v182 = vadd.f32 %v180, %v181
    %v183 = vrot.slane %v182, 2
    %v184 = vadd.f32 %v182, %v183
    %v185 = vrot.slane %v184, 1
    %v186 = vadd.f32 %v184, %v185
    %v187 = vmul.f32 %v186, %v177
    %v188 = vadd.f32 %v187, 1e-05
    %v189 = vrsqrt.pop %v188
    %v190 = vmul.f32 %v189, %v188
    %v191 = vmul.f32 %v190, %v189
    %v192 = vmul.f32 0.5, %v191
    %v193 = vsub.f32 1.5, %v192
    %v194 = vmul.f32 %v189, %v193
    %vm195 = vweird.f32 %v188
    %vm196 = vweird.f32 %v189
    %vm197 = vmor %vm195, %vm196
    %v198 = vsel %vm197, %v189, %v194
    %v199 = vmul.f32 %v103, %v198
    %v200 = vmul.f32 %v178, %v199
    %v202 = vrot.slane %v200, 7
    %v204 = vsub.f32 %v103, %v202
    %v205 = vperm.slane %v199, 0
    %v206 = vmul.f32 %v163, %v205
    %v207 = vperm.slane %v204, 1
    %v208 = vadd.f32 %v206, %v207
    %v209 = vmax.f32 %v208, 0.0
    %v210 = vld [vmem:[#allocation2 + $0x28] sm:$0xff]
    %v211 = vld [vmem:[#allocation2 + $0x30] sm:$0xff]
    %v212 = vld [vmem:[#allocation2 + $0x38] sm:$0xff]
    %v213 = vld [vmem:[#allocation2 + $0x40] sm:$0xff]
    %v214 = vld [vmem:[#allocation2 + $0x48] sm:$0xff]
    %v215 = vld [vmem:[#allocation2 + $0x50] sm:$0xff]
    %v216 = vld [vmem:[#allocation2 + $0x58] sm:$0xff]
    %v217 = vld [vmem:[#allocation2 + $0x60] sm:$0xff]
    %v218 = vld [vmem:[#allocation2 + $0x68] sm:$0xff]
    %v219 = vld [vmem:[#allocation2 + $0x70] sm:$0xff]
    %v220 = vld [vmem:[#allocation2 + $0x78] sm:$0xff]
    %v221 = vld [vmem:[#allocation2 + $0x80] sm:$0xff]
    %v222 = vld [vmem:[#allocation2 + $0x88] sm:$0xff]
    %v223 = vld [vmem:[#allocation2 + $0x90] sm:$0xff]
    %v224 = vld [vmem:[#allocation2 + $0x98] sm:$0xff]
    %v225 = vld [vmem:[#allocation2 + $0xa0] sm:$0xff]
    %226 = vmatpush.msra.mxu0 %v225
    %227 = vmatpush.msra.mxu0 %v224
    %228 = vmatpush.msra.mxu0 %v223
    %229 = vmatpush.msra.mxu0 %v222
    %230 = vmatpush.msra.mxu0 %v221
    %231 = vmatpush.msra.mxu0 %v220
    %232 = vmatpush.msra.mxu0 %v219
    %233 = vmatpush.msra.mxu0 %v218
    %234 = vmatpush.msra.mxu0 %v217
    %235 = vmatpush.msra.mxu0 %v216
    %236 = vmatpush.msra.mxu0 %v215
    %237 = vmatpush.msra.mxu0 %v214
    %238 = vmatpush.msra.mxu0 %v213
    %239 = vmatpush.msra.mxu0 %v212
    %240 = vmatpush.msra.mxu0 %v211
    %241 = vmatpush.msra.mxu0 %v210
    %242 = vmatmul.f32.gmra.mxu0 %v209
    %v243 = vpop.f32.mrf.mxu0
    %v244 = vadd.f32 0.0, %v243
    %245 = vdwg.mxu0
    %vm246 = vcmask 523264
    %v247 = vsel %vm246, %v244, 0.0
    %v248 = vrot.slane %v247, 4
    %v249 = vadd.f32 %v247, %v248
    %v250 = vrot.slane %v249, 2
    %v251 = vadd.f32 %v249, %v250
    %v252 = vrot.slane %v251, 1
    %v253 = vadd.f32 %v251, %v252
    %v254 = vmul.f32 %v253, %v177
    %v255 = vsub.f32 %v244, %v254
    %v256 = vmul.f32 %v255, %v255
    %v257 = vsel %vm246, %v256, 0.0
    %v258 = vrot.slane %v257, 4
    %v259 = vadd.f32 %v257, %v258
    %v260 = vrot.slane %v259, 2
    %v261 = vadd.f32 %v259, %v260
    %v262 = vrot.slane %v261, 1
    %v263 = vadd.f32 %v261, %v262
    %v264 = vmul.f32 %v263, %v177
    %v265 = vadd.f32 %v264, 1e-05
    %v266 = vrsqrt.pop %v265
    %v267 = vmul.f32 %v266, %v265
    %v268 = vmul.f32 %v267, %v266
    %v269 = vmul.f32 0.5, %v268
    %v270 = vsub.f32 1.5, %v269
    %v271 = vmul.f32 %v266, %v270
    %vm272 = vweird.f32 %v265
    %vm273 = vweird.f32 %v266
    %vm274 = vmor %vm272, %vm273
    %v275 = vsel %vm274, %v266, %v271
    %v276 = vmul.f32 %v103, %v275
    %v277 = vmul.f32 %v254, %v276
    %v279 = vrot.slane %v277, 7
    %v281 = vsub.f32 %v103, %v279
    %v282 = vperm.slane %v276, 2
    %v283 = vmul.f32 %v244, %v282
    %v284 = vperm.slane %v281, 3
    %v285 = vadd.f32 %v283, %v284
    %v286 = vmax.f32 %v285, 0.0
    %v287 = vld [vmem:[#allocation2 + $0xa8] sm:$0xff]
    %v288 = vld [vmem:[#allocation2 + $0xb0] sm:$0xff]
    %v289 = vld [vmem:[#allocation2 + $0xb8] sm:$0xff]
    %v290 = vld [vmem:[#allocation2 + $0xc0] sm:$0xff]
    %v291 = vld [vmem:[#allocation2 + $0xc8] sm:$0xff]
    %v292 = vld [vmem:[#allocation2 + $0xd0] sm:$0xff]
    %v293 = vld [vmem:[#allocation2 + $0xd8] sm:$0xff]
    %v294 = vld [vmem:[#allocation2 + $0xe0] sm:$0xff]
    %v296 = vsel %vm246, %v286, 0
    %298 = vmatpush.msra.mxu0 0.0
    %299 = vmatpush.msra.mxu0 0.0
    %300 = vmatpush.msra.mxu0 0.0
    %301 = vmatpush.msra.mxu0 0.0
    %302 = vmatpush.msra.mxu0 0.0
    %303 = vmatpush.msra.mxu0 0.0
    %304 = vmatpush.msra.mxu0 0.0
    %305 = vmatpush.msra.mxu0 0.0
    %306 = vmatpush.msra.mxu0 %v294
    %307 = vmatpush.msra.mxu0 %v293
    %308 = vmatpush.msra.mxu0 %v292
    %309 = vmatpush.msra.mxu0 %v291
    %310 = vmatpush.msra.mxu0 %v290
    %311 = vmatpush.msra.mxu0 %v289
    %312 = vmatpush.msra.mxu0 %v288
    %313 = vmatpush.msra.mxu0 %v287
    %314 = vmatmul.f32.gmra.mxu0 %v296
    %v315 = vpop.f32.mrf.mxu0
    %v316 = vadd.f32 0.0, %v315
    %317 = vdwg.mxu0
    %vm318 = vcmask 130048
    %v319 = vsel %vm318, %v316, 0.0
    %v320 = vrot.slane %v319, 4
    %v321 = vadd.f32 %v319, %v320
    %v322 = vrot.slane %v321, 2
    %v323 = vadd.f32 %v321, %v322
    %v324 = vrot.slane %v323, 1
    %v325 = vadd.f32 %v323, %v324
    %v326 = vmul.f32 %v325, %v177
    %v327 = vsub.f32 %v316, %v326
    %v328 = vmul.f32 %v327, %v327
    %v329 = vsel %vm318, %v328, 0.0
    %v330 = vrot.slane %v329, 4
    %v331 = vadd.f32 %v329, %v330
    %v332 = vrot.slane %v331, 2
    %v333 = vadd.f32 %v331, %v332
    %v334 = vrot.slane %v333, 1
    %v335 = vadd.f32 %v333, %v334
    %v336 = vmul.f32 %v335, %v177
    %v337 = vadd.f32 %v336, 1e-05
    %v338 = vrsqrt.pop %v337
    %v339 = vmul.f32 %v338, %v337
    %v340 = vmul.f32 %v339, %v338
    %v341 = vmul.f32 0.5, %v340
    %v342 = vsub.f32 1.5, %v341
    %v343 = vmul.f32 %v338, %v342
    %vm344 = vweird.f32 %v337
    %vm345 = vweird.f32 %v338
    %vm346 = vmor %vm344, %vm345
    %v347 = vsel %vm346, %v338, %v343
    %v348 = vmul.f32 %v103, %v347
    %v349 = vmul.f32 %v326, %v348
    %v351 = vrot.slane %v349, 7
    %v353 = vsub.f32 %v103, %v351
    %v354 = vperm.slane %v348, 4
    %v355 = vmul.f32 %v316, %v354
    %v356 = vperm.slane %v353, 5
    %v357 = vadd.f32 %v355, %v356
    %v358 = vmax.f32 %v357, 0.0
    %359 = vst.msk [vmem:[#allocation5] sm:$0xff] %vm318, %v358
    // Predicated region
    $region22: #{tpu_custom_call.1} parent=1 // pred_check
      _
    $region23: #{tpu_custom_call.1} parent=1 // pred_check_branch
      %361 = sbr.rel (0) target = $region25
    $region24: #{tpu_custom_call.1} parent=1 // pred_region
      %363 = vsyncadd [#allocation4], 0
      %s365 = sshll.u32 [#allocation5], 4
      %s366 = int_to_ptr.vmem [resolvable:$true] %s365
      %s367 = sshll.u32 %s4, 4
      %s368 = int_to_ptr.hbm [resolvable:$true] %s367
      %370 = dma.vmem_to_hbm [thread:$0]  %s366, 128, %s368, [#allocation4]
    $region25: #{tpu_custom_call.1} parent=1 // pred_fallthru
      _
    // Predicated region
    $region26: #{tpu_custom_call.1} parent=1 // pred_check
      _
    $region27: #{tpu_custom_call.1} parent=1 // pred_check_branch
      %372 = sbr.rel (0) target = $region29
    $region28: #{tpu_custom_call.1} parent=1 // pred_region
      %374 = dma.done [#allocation4], 128
    $region29: #{tpu_custom_call.1} parent=1 // pred_fallthru
      _
    %375 = vsyncpa [#allocation3], 1
    %376 = vsyncpa [#allocation4], 1

</llo_original>
